<compile_context>
chip_gen: v7x
topology: tpu7x:2x2x1
jax: 0.10.0
libtpu: 0.0.40
codegen_flags: <defaults>
</compile_context>

<pallas_src>
import jax
import jax.numpy as jnp
from jax.experimental import pallas as pl
from jax.experimental.pallas import tpu as pltpu


def _round_up(x, m):
    return ((x + m - 1) // m) * m


def _complex_diag_kernel(idx_ref, emb_ref, real_ref, imag_ref, out_ref):
    # idx_ref:  (TM, 1)        int32  operator index per row
    # emb_ref:  (TM, dim)             embeddings block
    # real_ref: (NOPS_PAD, half)      resident operator real table
    # imag_ref: (NOPS_PAD, half)      resident operator imag table
    # out_ref:  (TM, dim)
    tm = emb_ref.shape[0]
    half = real_ref.shape[-1]
    nops = real_ref.shape[0]

    # One-hot gather on the MXU (otherwise idle in this elementwise kernel).
    idx = idx_ref[...]                                            # (TM, 1)
    iota = jax.lax.broadcasted_iota(jnp.int32, (tm, nops), 1)     # (TM, NOPS_PAD)
    onehot = (idx == iota).astype(jnp.float32)                    # (TM, NOPS_PAD)
    real_b = jnp.dot(onehot, real_ref[...],
                     preferred_element_type=jnp.float32)          # (TM, half)
    imag_b = jnp.dot(onehot, imag_ref[...],
                     preferred_element_type=jnp.float32)          # (TM, half)

    emb = emb_ref[...]
    real_a = emb[:, :half].astype(jnp.float32)
    imag_a = emb[:, half:].astype(jnp.float32)

    # Direct sliced stores of the two halves (no concatenate temporary).
    out_ref[:, :half] = (real_a * real_b - imag_a * imag_b).astype(out_ref.dtype)
    out_ref[:, half:] = (real_a * imag_b + imag_a * real_b).astype(out_ref.dtype)


def complex_diagonal_dynamic_operator(embeddings, operator_idxs, real, imag,
                                      *, block_rows=512):
    """embeddings: (..., dim) float; operator_idxs: (...) int; real/imag: (num_ops, dim//2)."""
    dim = embeddings.shape[-1]
    assert dim % 2 == 0, "dim must be even"
    half = dim // 2
    lead_shape = embeddings.shape[:-1]
    assert operator_idxs.shape == lead_shape
    num_ops = real.shape[0]
    assert real.shape == (num_ops, half) and imag.shape == (num_ops, half)

    emb_flat = embeddings.reshape(-1, dim)
    idx_flat = operator_idxs.reshape(-1).astype(jnp.int32)
    n = emb_flat.shape[0]

    # Row tile: as large as useful, multiple of 8 sublanes, dividing padded n.
    tm = min(block_rows, _round_up(n, 8))
    n_pad = _round_up(n, tm)
    if n_pad != n:
        emb_flat = jnp.pad(emb_flat, ((0, n_pad - n), (0, 0)))
        idx_flat = jnp.pad(idx_flat, (0, n_pad - n))  # padded rows -> valid op 0
    idx_col = idx_flat.reshape(n_pad, 1)

    # Pad the (tiny) operator tables along num_ops to a multiple of 128 so the
    # in-kernel one-hot is lane-dense; padded rows are never selected.
    nops_pad = _round_up(num_ops, 128)
    if nops_pad != num_ops:
        pad = ((0, nops_pad - num_ops), (0, 0))
        real = jnp.pad(real, pad)
        imag = jnp.pad(imag, pad)
    real = real.astype(jnp.float32)
    imag = imag.astype(jnp.float32)

    grid = (n_pad // tm,)
    out_flat = pl.pallas_call(
        _complex_diag_kernel,
        out_shape=jax.ShapeDtypeStruct((n_pad, dim), embeddings.dtype),
        grid_spec=pltpu.PrefetchScalarGridSpec(
            num_scalar_prefetch=0,
            grid=grid,
            in_specs=[
                pl.BlockSpec((tm, 1), lambda i: (i, 0)),           # operator idx
                pl.BlockSpec((tm, dim), lambda i: (i, 0)),         # embeddings
                pl.BlockSpec((nops_pad, half), lambda i: (0, 0)),  # real table (VMEM-resident)
                pl.BlockSpec((nops_pad, half), lambda i: (0, 0)),  # imag table (VMEM-resident)
            ],
            out_specs=pl.BlockSpec((tm, dim), lambda i: (i, 0)),
        ),
        compiler_params=pltpu.CompilerParams(
            dimension_semantics=("parallel",)),
    )(idx_col, emb_flat, real, imag)

    out_flat = out_flat[:n]
    return out_flat.reshape(*lead_shape, dim)


def _reference(embeddings, operator_idxs, real, imag):
    dim = embeddings.shape[-1]
    half = dim // 2
    real_a = embeddings[..., :half]
    imag_a = embeddings[..., half:]
    real_b = real[operator_idxs]
    imag_b = imag[operator_idxs]
    return jnp.concatenate(
        [real_a * real_b - imag_a * imag_b,
         real_a * imag_b + imag_a * real_b], axis=-1)


if __name__ == "__main__":
    dim = 32                # even: first half real, second half imaginary
    num_operations = 5
    lead = (2, 4)           # embeddings have shape (2, 4, 32)

    key = jax.random.PRNGKey(0)
    k_emb, k_idx, k_real, k_imag = jax.random.split(key, 4)

    embeddings = jax.random.normal(k_emb, (*lead, dim), dtype=jnp.float32)
    operator_idxs = jax.random.randint(k_idx, lead, 0, num_operations, dtype=jnp.int32)

    # Module __init__ uses ones/zeros; use deterministic random values so the
    # complex product is non-trivial while still fully reproducible.
    real = jax.random.normal(k_real, (num_operations, dim // 2), dtype=jnp.float32)
    imag = jax.random.normal(k_imag, (num_operations, dim // 2), dtype=jnp.float32)

    out = complex_diagonal_dynamic_operator(embeddings, operator_idxs, real, imag)
    out = jax.block_until_ready(out)

    ref = _reference(embeddings, operator_idxs, real, imag)
    assert out.shape == embeddings.shape and out.dtype == embeddings.dtype
    assert jnp.allclose(out, ref, atol=1e-5, rtol=1e-5)
    print("KERNEL_OK")
</pallas_src>

<mosaic_0001>
module attributes {stable_mosaic.version = 11 : i64} {
  func.func @_complex_diag_kernel(%arg0: i32, %arg1: memref<8x1xi32, #tpu.memory_space<vmem>>, %arg2: memref<8x32xf32, #tpu.memory_space<vmem>>, %arg3: memref<128x16xf32, #tpu.memory_space<vmem>>, %arg4: memref<128x16xf32, #tpu.memory_space<vmem>>, %arg5: memref<8x32xf32, #tpu.memory_space<vmem>>) attributes {dimension_semantics = [#tpu.dimension_semantics<parallel>], iteration_bounds = array<i64: 1>, scalar_prefetch = 0 : i64, scratch_operands = 0 : i64, tpu.core_type = #tpu.core_type<tc>, window_params = [{transform_indices = @transform_0, window_bounds = array<i64: 8, 1>}, {transform_indices = @transform_1, window_bounds = array<i64: 8, 32>}, {pipeline_mode = #tpu.pipeline_mode<synchronous>, transform_indices = @transform_2, window_bounds = array<i64: 128, 16>}, {pipeline_mode = #tpu.pipeline_mode<synchronous>, transform_indices = @transform_3, window_bounds = array<i64: 128, 16>}, {transform_indices = @transform_4, window_bounds = array<i64: 8, 32>}]} {
    %c0 = arith.constant 0 : index
    %c0_0 = arith.constant 0 : index
    %0 = vector.load %arg1[%c0, %c0_0] : memref<8x1xi32, #tpu.memory_space<vmem>>, vector<8x1xi32>
    %1 = tpu.iota {dimensions = array<i32: 1>} : vector<8x128xi32>
    %2 = vector.broadcast %0 : vector<8x1xi32> to vector<8x128xi32>
    %3 = arith.cmpi eq, %2, %1 : vector<8x128xi32>
    %4 = arith.extui %3 : vector<8x128xi1> to vector<8x128xi32>
    %5 = arith.sitofp %4 : vector<8x128xi32> to vector<8x128xf32>
    %c0_1 = arith.constant 0 : index
    %c0_2 = arith.constant 0 : index
    %6 = vector.load %arg3[%c0_1, %c0_2] : memref<128x16xf32, #tpu.memory_space<vmem>>, vector<128x16xf32>
    %cst = arith.constant dense<0.000000e+00> : vector<8x16xf32>
    %7 = tpu.matmul %5, %6, %cst {dimension_numbers = #tpu.dot_dimension_numbers<[1], [0], [0], [1], [0, 0, 1, 1], [], []>} : vector<8x128xf32>, vector<128x16xf32>, vector<8x16xf32> -> vector<8x16xf32>
    %c0_3 = arith.constant 0 : index
    %c0_4 = arith.constant 0 : index
    %8 = vector.load %arg4[%c0_3, %c0_4] : memref<128x16xf32, #tpu.memory_space<vmem>>, vector<128x16xf32>
    %cst_5 = arith.constant dense<0.000000e+00> : vector<8x16xf32>
    %9 = tpu.matmul %5, %8, %cst_5 {dimension_numbers = #tpu.dot_dimension_numbers<[1], [0], [0], [1], [0, 0, 1, 1], [], []>} : vector<8x128xf32>, vector<128x16xf32>, vector<8x16xf32> -> vector<8x16xf32>
    %c0_6 = arith.constant 0 : index
    %c0_7 = arith.constant 0 : index
    %10 = vector.load %arg2[%c0_6, %c0_7] : memref<8x32xf32, #tpu.memory_space<vmem>>, vector<8x32xf32>
    %11 = vector.extract_strided_slice %10 {offsets = [0, 0], sizes = [8, 16], strides = [1, 1]} : vector<8x32xf32> to vector<8x16xf32>
    %12 = vector.extract_strided_slice %10 {offsets = [0, 16], sizes = [8, 16], strides = [1, 1]} : vector<8x32xf32> to vector<8x16xf32>
    %13 = arith.mulf %11, %7 : vector<8x16xf32>
    %14 = arith.mulf %12, %9 : vector<8x16xf32>
    %15 = arith.subf %13, %14 : vector<8x16xf32>
    %c0_8 = arith.constant 0 : index
    %c0_9 = arith.constant 0 : index
    %16 = vector.load %arg5[%c0_8, %c0_9] : memref<8x32xf32, #tpu.memory_space<vmem>>, vector<8x16xf32>
    tpu.vector_store %arg5[%c0_8, %c0_9], %15 {strides = array<i32>} : memref<8x32xf32, #tpu.memory_space<vmem>>, vector<8x16xf32>,
    %17 = arith.mulf %11, %9 : vector<8x16xf32>
    %18 = arith.mulf %12, %7 : vector<8x16xf32>
    %19 = arith.addf %17, %18 : vector<8x16xf32>
    %c0_10 = arith.constant 0 : index
    %c16 = arith.constant 16 : index
    %20 = vector.load %arg5[%c0_10, %c16] : memref<8x32xf32, #tpu.memory_space<vmem>>, vector<8x16xf32>
    tpu.vector_store %arg5[%c0_10, %c16], %19 {strides = array<i32>} : memref<8x32xf32, #tpu.memory_space<vmem>>, vector<8x16xf32>,
    return
  }
  func.func @transform_0(%arg0: i32) -> (i32, i32) {
    %c0_i32 = arith.constant 0 : i32
    %c0_i32_0 = arith.constant 0 : i32
    return %arg0, %c0_i32 : i32, i32
  }
  func.func @transform_1(%arg0: i32) -> (i32, i32) {
    %c0_i32 = arith.constant 0 : i32
    %c0_i32_0 = arith.constant 0 : i32
    return %arg0, %c0_i32 : i32, i32
  }
  func.func @transform_2(%arg0: i32) -> (i32, i32) {
    %c0_i32 = arith.constant 0 : i32
    %c0_i32_0 = arith.constant 0 : i32
    %c0_i32_1 = arith.constant 0 : i32
    return %c0_i32, %c0_i32_0 : i32, i32
  }
  func.func @transform_3(%arg0: i32) -> (i32, i32) {
    %c0_i32 = arith.constant 0 : i32
    %c0_i32_0 = arith.constant 0 : i32
    %c0_i32_1 = arith.constant 0 : i32
    return %c0_i32, %c0_i32_0 : i32, i32
  }
  func.func @transform_4(%arg0: i32) -> (i32, i32) {
    %c0_i32 = arith.constant 0 : i32
    %c0_i32_0 = arith.constant 0 : i32
    return %arg0, %c0_i32 : i32, i32
  }
}

</mosaic_0001>

<llo_original>
// kernel: tpu_custom_call.1
$region0: #{tpu_custom_call.1}
  #allocation0 [shape = 'u32[]', space=smem, size = 0x4, offset = 0x4, fixed_abs, tag = 'smem constant byte address 0x4 - core index']
  #allocation1 [shape = 'u32[144,128]{1,0:T(1,128)}', space=vmem, size = 0x12000, scoped, tag = 'internal scratch']
  %s0 = inlined_call_operand.vmem [shape: s32[8,1], index: 0, kind: input, shape index: {}]
  %s1 = inlined_call_operand.vmem [shape: f32[8,32], index: 1, kind: input, shape index: {}]
  %s2 = inlined_call_operand.vmem [shape: f32[128,16], index: 2, kind: input, shape index: {}]
  %s3 = inlined_call_operand.vmem [shape: f32[128,16], index: 3, kind: input, shape index: {}]
  %s4 = inlined_call_operand.hbm [shape: f32[8,32], index: 4, kind: output, shape index: {}]
  %s5 = sld [smem:[#allocation0]]
  $region26: #{tpu_custom_call.1} parent=0
    _
  %s7 = ssub.s32 1, %s5
  %s8 = scalar_select 0, %s7, %s5
  $region1: #{tpu_custom_call.1} parent=0
    #allocation2 [shape = 'u8[4096]{0}', space=vmem, size = 0x1000, scoped, tag = 'output window, operand 0, single buffered']
    #allocation3 [shape = 's32[1]{0}', space=sflag, size = 0x4, scoped, tag = 'scoped memory for tpu_custom_call.1']
    %9 = vsyncpa [#allocation3], 0
    // Predicated region
    $region2: #{tpu_custom_call.1} parent=1 // pred_check
      _
    $region3: #{tpu_custom_call.1} parent=1 // pred_check_branch
      %11 = sbr.rel (0) target = $region5
    $region4: #{tpu_custom_call.1} parent=1 // pred_region
      _
    $region5: #{tpu_custom_call.1} parent=1 // pred_fallthru
      _
    // Predicated region
    $region6: #{tpu_custom_call.1} parent=1 // pred_check
      _
    $region7: #{tpu_custom_call.1} parent=1 // pred_check_branch
      %13 = sbr.rel (0) target = $region9
    $region8: #{tpu_custom_call.1} parent=1 // pred_region
      _
    $region9: #{tpu_custom_call.1} parent=1 // pred_fallthru
      _
    // Predicated region
    $region10: #{tpu_custom_call.1} parent=1 // pred_check
      _
    $region11: #{tpu_custom_call.1} parent=1 // pred_check_branch
      %15 = sbr.rel (0) target = $region13
    $region12: #{tpu_custom_call.1} parent=1 // pred_region
      _
    $region13: #{tpu_custom_call.1} parent=1 // pred_fallthru
      _
    // Predicated region
    $region14: #{tpu_custom_call.1} parent=1 // pred_check
      _
    $region15: #{tpu_custom_call.1} parent=1 // pred_check_branch
      %17 = sbr.rel (0) target = $region17
    $region16: #{tpu_custom_call.1} parent=1 // pred_region
      _
    $region17: #{tpu_custom_call.1} parent=1 // pred_fallthru
      _
    %v18 = vld [vmem:[%s0] sm:$0xff]
    %v19 = vlaneseq
    %v20 = vand.u32 %v19, 127
    %21 = vset.pattern.permute.xlu0 0
    %22 = vperm.xlu0 %21, %v18
    %v23 = vpop.permute.xlu0 %22
    %vm24 = vcmp.eq.s32.totalorder %v23, %v20
    %v25 = vsel %vm24, 1, 0
    %v26 = vcvt.s32.f32 %v25
    %v27 = vld [vmem:[%s2] sm:$0xff]
    %v28 = vld [vmem:[%s2 + $0x8] sm:$0xff]
    %v29 = vld [vmem:[%s2 + $0x10] sm:$0xff]
    %v30 = vld [vmem:[%s2 + $0x18] sm:$0xff]
    %v31 = vld [vmem:[%s2 + $0x20] sm:$0xff]
    %v32 = vld [vmem:[%s2 + $0x28] sm:$0xff]
    %v33 = vld [vmem:[%s2 + $0x30] sm:$0xff]
    %v34 = vld [vmem:[%s2 + $0x38] sm:$0xff]
    %v35 = vld [vmem:[%s2 + $0x40] sm:$0xff]
    %v36 = vld [vmem:[%s2 + $0x48] sm:$0xff]
    %v37 = vld [vmem:[%s2 + $0x50] sm:$0xff]
    %v38 = vld [vmem:[%s2 + $0x58] sm:$0xff]
    %v39 = vld [vmem:[%s2 + $0x60] sm:$0xff]
    %v40 = vld [vmem:[%s2 + $0x68] sm:$0xff]
    %v41 = vld [vmem:[%s2 + $0x70] sm:$0xff]
    %v42 = vld [vmem:[%s2 + $0x78] sm:$0xff]
    %43 = vmatprep.subr.mxu0 0.0
    %44 = vmatpush1.msra.mxu0 %v27
    %45 = vmatprep.subr.mxu0 0.0
    %46 = vmatpush1.msra.mxu0 %v28
    %47 = vmatprep.subr.mxu0 0.0
    %48 = vmatpush1.msra.mxu0 %v29
    %49 = vmatprep.subr.mxu0 0.0
    %50 = vmatpush1.msra.mxu0 %v30
    %51 = vmatprep.subr.mxu0 0.0
    %52 = vmatpush1.msra.mxu0 %v31
    %53 = vmatprep.subr.mxu0 0.0
    %54 = vmatpush1.msra.mxu0 %v32
    %55 = vmatprep.subr.mxu0 0.0
    %56 = vmatpush1.msra.mxu0 %v33
    %57 = vmatprep.subr.mxu0 0.0
    %58 = vmatpush1.msra.mxu0 %v34
    %59 = vmatprep.subr.mxu0 0.0
    %60 = vmatpush1.msra.mxu0 %v35
    %61 = vmatprep.subr.mxu0 0.0
    %62 = vmatpush1.msra.mxu0 %v36
    %63 = vmatprep.subr.mxu0 0.0
    %64 = vmatpush1.msra.mxu0 %v37
    %65 = vmatprep.subr.mxu0 0.0
    %66 = vmatpush1.msra.mxu0 %v38
    %67 = vmatprep.subr.mxu0 0.0
    %68 = vmatpush1.msra.mxu0 %v39
    %69 = vmatprep.subr.mxu0 0.0
    %70 = vmatpush1.msra.mxu0 %v40
    %71 = vmatprep.subr.mxu0 0.0
    %72 = vmatpush1.msra.mxu0 %v41
    %73 = vmatprep.subr.mxu0 0.0
    %74 = vmatpush1.msra.mxu0 %v42
    %75 = vmatprep.subr.mxu0 0.0
    %76 = vmatpush1.msra.mxu0 0.0
    %77 = vmatprep.subr.mxu0 0.0
    %78 = vmatpush1.msra.mxu0 0.0
    %79 = vmatprep.subr.mxu0 0.0
    %80 = vmatpush1.msra.mxu0 0.0
    %81 = vmatprep.subr.mxu0 0.0
    %82 = vmatpush1.msra.mxu0 0.0
    %83 = vmatprep.subr.mxu0 0.0
    %84 = vmatpush1.msra.mxu0 0.0
    %85 = vmatprep.subr.mxu0 0.0
    %86 = vmatpush1.msra.mxu0 0.0
    %87 = vmatprep.subr.mxu0 0.0
    %88 = vmatpush1.msra.mxu0 0.0
    %89 = vmatprep.subr.mxu0 0.0
    %90 = vmatpush1.msra.mxu0 0.0
    %91 = vmatprep.subr.mxu0 0.0
    %92 = vmatpush1.msra.mxu0 0.0
    %93 = vmatprep.subr.mxu0 0.0
    %94 = vmatpush1.msra.mxu0 0.0
    %95 = vmatprep.subr.mxu0 0.0
    %96 = vmatpush1.msra.mxu0 0.0
    %97 = vmatprep.subr.mxu0 0.0
    %98 = vmatpush1.msra.mxu0 0.0
    %99 = vmatprep.subr.mxu0 0.0
    %100 = vmatpush1.msra.mxu0 0.0
    %101 = vmatprep.subr.mxu0 0.0
    %102 = vmatpush1.msra.mxu0 0.0
    %103 = vmatprep.subr.mxu0 0.0
    %104 = vmatpush1.msra.mxu0 0.0
    %105 = vmatprep.subr.mxu0 0.0
    %106 = vmatpush1.msra.mxu0 0.0
    %107 = vmatprep.mubr.f32.mxu0 0.0
    %108 = vmatmul.mubr.f32.gmra.mrb[0].mxu0 %v26
    %v109 = vpop.f32.mrb[0].mxu0
    %v110 = vadd.f32 0.0, %v109
    %v111 = vpop.f32.mrb[0].mxu0
    %112 = vdwg.mxu0
    %v113 = vld [vmem:[%s3] sm:$0xff]
    %v114 = vld [vmem:[%s3 + $0x8] sm:$0xff]
    %v115 = vld [vmem:[%s3 + $0x10] sm:$0xff]
    %v116 = vld [vmem:[%s3 + $0x18] sm:$0xff]
    %v117 = vld [vmem:[%s3 + $0x20] sm:$0xff]
    %v118 = vld [vmem:[%s3 + $0x28] sm:$0xff]
    %v119 = vld [vmem:[%s3 + $0x30] sm:$0xff]
    %v120 = vld [vmem:[%s3 + $0x38] sm:$0xff]
    %v121 = vld [vmem:[%s3 + $0x40] sm:$0xff]
    %v122 = vld [vmem:[%s3 + $0x48] sm:$0xff]
    %v123 = vld [vmem:[%s3 + $0x50] sm:$0xff]
    %v124 = vld [vmem:[%s3 + $0x58] sm:$0xff]
    %v125 = vld [vmem:[%s3 + $0x60] sm:$0xff]
    %v126 = vld [vmem:[%s3 + $0x68] sm:$0xff]
    %v127 = vld [vmem:[%s3 + $0x70] sm:$0xff]
    %v128 = vld [vmem:[%s3 + $0x78] sm:$0xff]
    %129 = vmatprep.subr.mxu0 0.0
    %130 = vmatpush1.msra.mxu0 %v113
    %131 = vmatprep.subr.mxu0 0.0
    %132 = vmatpush1.msra.mxu0 %v114
    %133 = vmatprep.subr.mxu0 0.0
    %134 = vmatpush1.msra.mxu0 %v115
    %135 = vmatprep.subr.mxu0 0.0
    %136 = vmatpush1.msra.mxu0 %v116
    %137 = vmatprep.subr.mxu0 0.0
    %138 = vmatpush1.msra.mxu0 %v117
    %139 = vmatprep.subr.mxu0 0.0
    %140 = vmatpush1.msra.mxu0 %v118
    %141 = vmatprep.subr.mxu0 0.0
    %142 = vmatpush1.msra.mxu0 %v119
    %143 = vmatprep.subr.mxu0 0.0
    %144 = vmatpush1.msra.mxu0 %v120
    %145 = vmatprep.subr.mxu0 0.0
    %146 = vmatpush1.msra.mxu0 %v121
    %147 = vmatprep.subr.mxu0 0.0
    %148 = vmatpush1.msra.mxu0 %v122
    %149 = vmatprep.subr.mxu0 0.0
    %150 = vmatpush1.msra.mxu0 %v123
    %151 = vmatprep.subr.mxu0 0.0
    %152 = vmatpush1.msra.mxu0 %v124
    %153 = vmatprep.subr.mxu0 0.0
    %154 = vmatpush1.msra.mxu0 %v125
    %155 = vmatprep.subr.mxu0 0.0
    %156 = vmatpush1.msra.mxu0 %v126
    %157 = vmatprep.subr.mxu0 0.0
    %158 = vmatpush1.msra.mxu0 %v127
    %159 = vmatprep.subr.mxu0 0.0
    %160 = vmatpush1.msra.mxu0 %v128
    %161 = vmatprep.subr.mxu0 0.0
    %162 = vmatpush1.msra.mxu0 0.0
    %163 = vmatprep.subr.mxu0 0.0
    %164 = vmatpush1.msra.mxu0 0.0
    %165 = vmatprep.subr.mxu0 0.0
    %166 = vmatpush1.msra.mxu0 0.0
    %167 = vmatprep.subr.mxu0 0.0
    %168 = vmatpush1.msra.mxu0 0.0
    %169 = vmatprep.subr.mxu0 0.0
    %170 = vmatpush1.msra.mxu0 0.0
    %171 = vmatprep.subr.mxu0 0.0
    %172 = vmatpush1.msra.mxu0 0.0
    %173 = vmatprep.subr.mxu0 0.0
    %174 = vmatpush1.msra.mxu0 0.0
    %175 = vmatprep.subr.mxu0 0.0
    %176 = vmatpush1.msra.mxu0 0.0
    %177 = vmatprep.subr.mxu0 0.0
    %178 = vmatpush1.msra.mxu0 0.0
    %179 = vmatprep.subr.mxu0 0.0
    %180 = vmatpush1.msra.mxu0 0.0
    %181 = vmatprep.subr.mxu0 0.0
    %182 = vmatpush1.msra.mxu0 0.0
    %183 = vmatprep.subr.mxu0 0.0
    %184 = vmatpush1.msra.mxu0 0.0
    %185 = vmatprep.subr.mxu0 0.0
    %186 = vmatpush1.msra.mxu0 0.0
    %187 = vmatprep.subr.mxu0 0.0
    %188 = vmatpush1.msra.mxu0 0.0
    %189 = vmatprep.subr.mxu0 0.0
    %190 = vmatpush1.msra.mxu0 0.0
    %191 = vmatprep.subr.mxu0 0.0
    %192 = vmatpush1.msra.mxu0 0.0
    %193 = vmatprep.mubr.f32.mxu0 0.0
    %194 = vmatmul.mubr.f32.gmra.mrb[0].mxu0 %v26
    %v195 = vpop.f32.mrb[0].mxu0
    %v196 = vadd.f32 0.0, %v195
    %v197 = vpop.f32.mrb[0].mxu0
    %198 = vdwg.mxu0
    %v199 = vld [vmem:[%s1] sm:$0xff]
    %v200 = vmul.f32 %v199, %v110
    %202 = vrot.lane.b32.xlu0 %v196, 16
    %v203 = vpop.permute.xlu0 %202
    %v205 = vmul.f32 %v199, %v203
    %207 = vrot.lane.b32.xlu0 %v205, 112
    %v208 = vpop.permute.xlu0 %207
    %v210 = vsub.f32 %v200, %v208
    %vm211 = vcmask 130048
    %212 = vst.msk [vmem:[#allocation2] sm:$0xff] %vm211, %v210
    %v213 = vmul.f32 %v199, %v196
    %215 = vrot.lane.b32.xlu0 %v110, 16
    %v216 = vpop.permute.xlu0 %215
    %v218 = vmul.f32 %v199, %v216
    %220 = vrot.lane.b32.xlu0 %v218, 112
    %v221 = vpop.permute.xlu0 %220
    %v223 = vadd.f32 %v213, %v221
    %225 = vrot.lane.b32.xlu0 %v223, 16
    %v226 = vpop.permute.xlu0 %225
    %vm228 = vcmask 261248
    %229 = vst.msk [vmem:[#allocation2] sm:$0xff] %vm228, %v226
    // Predicated region
    $region18: #{tpu_custom_call.1} parent=1 // pred_check
      _
    $region19: #{tpu_custom_call.1} parent=1 // pred_check_branch
      %231 = sbr.rel (0) target = $region21
    $region20: #{tpu_custom_call.1} parent=1 // pred_region
      %s233 = ssub.s32 128, 128
      %234 = vsyncadd [#allocation3], %s233
      %s236 = sshll.u32 [#allocation2], 4
      %s237 = int_to_ptr.vmem [resolvable:$true] %s236
      %239 = dma.vmem_to_hbm [thread:$0]  %s237, 128, %s4, [#allocation3]
    $region21: #{tpu_custom_call.1} parent=1 // pred_fallthru
      _
    // Predicated region
    $region22: #{tpu_custom_call.1} parent=1 // pred_check
      _
    $region23: #{tpu_custom_call.1} parent=1 // pred_check_branch
      %241 = sbr.rel (0) target = $region25
    $region24: #{tpu_custom_call.1} parent=1 // pred_region
      %242 = dma.done [#allocation3], 128
    $region25: #{tpu_custom_call.1} parent=1 // pred_fallthru
      _
    %243 = vsyncpa [#allocation3], 1

</llo_original>
